<compile_context>
chip_gen: v7x
topology: tpu7x:2x2x1
jax: 0.10.0
libtpu: 0.0.40
codegen_flags: <defaults>
</compile_context>

<pallas_src>
import functools

import jax
import jax.numpy as jnp
import numpy as np
from jax import lax
from jax.experimental import pallas as pl
from jax.experimental.pallas import tpu as pltpu


def _pick_tile(n, max_tile):
    """Largest tile <= max_tile that divides n and is a multiple of 8 (or n itself)."""
    if n <= max_tile:
        return n
    for t in range(max_tile, 0, -1):
        if n % t == 0 and t % 8 == 0:
            return t
    return n  # fallback: one full block (always a legal block shape)


def _row_normalize(x):
    """F.normalize(p=2, dim=-1, eps=1e-12): norms in f32, rsqrt, cast back."""
    xf = x.astype(jnp.float32)
    ssq = jnp.sum(xf * xf, axis=-1, keepdims=True)
    inv = lax.rsqrt(jnp.maximum(ssq, jnp.float32(1e-24)))  # == 1/max(||x||,1e-12)
    return (xf * inv).astype(x.dtype)


def _simclr_kernel(q_ref, k_ref, out_ref, m_sc, l_sc, tgt_sc, *,
                   temperature, normalize, batch_size, tile_r, tile_k):
    r = pl.program_id(0)          # row tile of the stacked (2B, D) activations
    kb = pl.program_id(1)         # key tile (reduction axis, last/innermost)
    n_kb = pl.num_programs(1)

    q = q_ref[...]
    kblk = k_ref[...]
    if normalize:
        q = _row_normalize(q)
        kblk = _row_normalize(kblk)

    # (tile_r, tile_k) similarity tile: MXU matmul in the input dtype, f32 acc.
    inv_t = jnp.float32(1.0 / temperature)
    s = lax.dot_general(q, kblk, (((1,), (1,)), ((), ())),
                        preferred_element_type=jnp.float32) * inv_t

    # Mask the global diagonal (the aa/bb self-similarity term).
    row_g = r * tile_r + lax.broadcasted_iota(jnp.int32, (tile_r, tile_k), 0)
    col_g = kb * tile_k + lax.broadcasted_iota(jnp.int32, (tile_r, tile_k), 1)
    s_masked = jnp.where(row_g == col_g, jnp.float32(-1e30), s)

    @pl.when(kb == 0)
    def _init():
        m_sc[...] = jnp.full((tile_r, 1), -jnp.inf, dtype=jnp.float32)
        l_sc[...] = jnp.zeros((tile_r, 1), dtype=jnp.float32)
        # labels == ones in the reference forward -> target is logits[:, 1],
        # i.e. global column 1 for rows 0 and B, global column 0 otherwise.
        rg = r * tile_r + lax.broadcasted_iota(jnp.int32, (tile_r, 1), 0)
        tgt_sc[...] = jnp.where((rg == 0) | (rg == batch_size),
                                s[:, 1:2], s[:, 0:1])

    # Online (flash-style) logsumexp update over key tiles.
    m_prev = m_sc[...]
    m_new = jnp.maximum(m_prev, jnp.max(s_masked, axis=1, keepdims=True))
    alpha = jnp.exp(m_prev - m_new)
    l_sc[...] = l_sc[...] * alpha + jnp.sum(jnp.exp(s_masked - m_new),
                                            axis=1, keepdims=True)
    m_sc[...] = m_new

    @pl.when(kb == n_kb - 1)
    def _finalize():
        lse = m_sc[...] + jnp.log(l_sc[...])
        out_ref[...] = lse - tgt_sc[...]


def simclr_loss(z_i, z_j, *, temperature=0.1, normalize=False,
                max_row_tile=256, max_key_tile=512):
    """NT-Xent loss matching SimclrCriterion.forward (labels = ones)."""
    B, D = z_i.shape
    assert z_j.shape == (B, D)
    assert B >= 2, "SimclrCriterion needs batch_size >= 2"

    z = jnp.concatenate([z_i, z_j], axis=0)            # (2B, D) stacked views
    n = 2 * B
    tr = _pick_tile(n, max_row_tile)
    tk = _pick_tile(n, max_key_tile)
    grid = (n // tr, n // tk)

    kernel = functools.partial(
        _simclr_kernel, temperature=float(temperature), normalize=bool(normalize),
        batch_size=B, tile_r=tr, tile_k=tk)

    per_row = pl.pallas_call(
        kernel,
        out_shape=jax.ShapeDtypeStruct((n, 1), jnp.float32),
        grid_spec=pltpu.PrefetchScalarGridSpec(
            num_scalar_prefetch=0,
            grid=grid,
            in_specs=[
                pl.BlockSpec((tr, D), lambda r, k: (r, 0)),   # query rows
                pl.BlockSpec((tk, D), lambda r, k: (k, 0)),   # key rows
            ],
            out_specs=pl.BlockSpec((tr, 1), lambda r, k: (r, 0)),
            scratch_shapes=[pltpu.VMEM((tr, 1), jnp.float32),   # running max
                            pltpu.VMEM((tr, 1), jnp.float32),   # running sum-exp
                            pltpu.VMEM((tr, 1), jnp.float32)],  # target logit
        ),
        compiler_params=pltpu.CompilerParams(
            dimension_semantics=("parallel", "arbitrary"),
            vmem_limit_bytes=64 * 1024 * 1024),
    )(z, z)

    # F.cross_entropy default reduction='mean' over the 2B rows.
    return jnp.sum(per_row) / jnp.float32(n)


def ref_loss_np(z_i, z_j, *, temperature=0.1, normalize=False):
    """Direct numpy transcription of the PyTorch forward (for verification)."""
    z_i = np.asarray(z_i, np.float32)
    z_j = np.asarray(z_j, np.float32)
    if normalize:
        z_i = z_i / np.maximum(np.linalg.norm(z_i, axis=-1, keepdims=True), 1e-12)
        z_j = z_j / np.maximum(np.linalg.norm(z_j, axis=-1, keepdims=True), 1e-12)
    B = z_i.shape[0]
    aa = z_i @ z_i.T / temperature
    bb = z_j @ z_j.T / temperature
    ab = z_i @ z_j.T / temperature
    ba = z_j @ z_i.T / temperature
    mask = ~np.eye(B, dtype=bool)
    pos = np.concatenate([np.diag(ab), np.diag(ba)])[:, None]
    aa_neg = aa[mask].reshape(B, B - 1)
    bb_neg = bb[mask].reshape(B, B - 1)
    ab_neg = ab[mask].reshape(B, B - 1)
    ba_neg = ba[mask].reshape(B, B - 1)
    neg = np.concatenate([np.concatenate([aa_neg, ab_neg], axis=1),
                          np.concatenate([ba_neg, bb_neg], axis=1)], axis=0)
    logits = np.concatenate([pos, neg], axis=1)          # (2B, 2B-1)
    m = logits.max(axis=1, keepdims=True)
    lse = m[:, 0] + np.log(np.exp(logits - m).sum(axis=1))
    # labels = torch.ones(2B) -> target class index 1
    return np.mean(lse - logits[:, 1])


if __name__ == "__main__":
    key = jax.random.PRNGKey(0)

    # Case 1/2: module-default-sized toy problem (batch=8, hidden=32), single tile.
    B, D = 8, 32
    k1, k2 = jax.random.split(key)
    z_i = jax.random.normal(k1, (B, D), dtype=jnp.float32)
    z_j = jax.random.normal(k2, (B, D), dtype=jnp.float32)
    for normalize in (False, True):
        loss = jax.block_until_ready(
            simclr_loss(z_i, z_j, temperature=0.1, normalize=normalize))
        ref = ref_loss_np(np.asarray(z_i), np.asarray(z_j),
                          temperature=0.1, normalize=normalize)
        np.testing.assert_allclose(np.asarray(loss), ref, rtol=1e-4, atol=1e-4)

    # Case 3: multi-tile path (exercises the online logsumexp across key blocks).
    B2, D2 = 64, 128
    k3, k4 = jax.random.split(k2)
    z_i2 = jax.random.normal(k3, (B2, D2), dtype=jnp.float32)
    z_j2 = jax.random.normal(k4, (B2, D2), dtype=jnp.float32)
    loss2 = jax.block_until_ready(
        simclr_loss(z_i2, z_j2, temperature=0.5, normalize=True,
                    max_row_tile=32, max_key_tile=32))
    ref2 = ref_loss_np(np.asarray(z_i2), np.asarray(z_j2),
                       temperature=0.5, normalize=True)
    np.testing.assert_allclose(np.asarray(loss2), ref2, rtol=1e-4, atol=1e-4)

    print("KERNEL_OK")
</pallas_src>

<mosaic_0001>
module attributes {stable_mosaic.version = 11 : i64} {
  func.func @_simclr_kernel(%arg0: i32, %arg1: i32, %arg2: memref<16x32xf32, #tpu.memory_space<vmem>>, %arg3: memref<16x32xf32, #tpu.memory_space<vmem>>, %arg4: memref<16x1xf32, #tpu.memory_space<vmem>>, %arg5: memref<16x1xf32, #tpu.memory_space<vmem>>, %arg6: memref<16x1xf32, #tpu.memory_space<vmem>>, %arg7: memref<16x1xf32, #tpu.memory_space<vmem>>) attributes {dimension_semantics = [#tpu.dimension_semantics<parallel>, #tpu.dimension_semantics<arbitrary>], iteration_bounds = array<i64: 1, 1>, scalar_prefetch = 0 : i64, scratch_operands = 3 : i64, tpu.core_type = #tpu.core_type<tc>, window_params = [{transform_indices = @transform_0, window_bounds = array<i64: 16, 32>}, {transform_indices = @transform_1, window_bounds = array<i64: 16, 32>}, {transform_indices = @transform_2, window_bounds = array<i64: 16, 1>}]} {
    %c0 = arith.constant 0 : index
    %c0_0 = arith.constant 0 : index
    %0 = vector.load %arg2[%c0, %c0_0] : memref<16x32xf32, #tpu.memory_space<vmem>>, vector<16x32xf32>
    %c0_1 = arith.constant 0 : index
    %c0_2 = arith.constant 0 : index
    %1 = vector.load %arg3[%c0_1, %c0_2] : memref<16x32xf32, #tpu.memory_space<vmem>>, vector<16x32xf32>
    %cst = arith.constant dense<0.000000e+00> : vector<16x16xf32>
    %2 = tpu.matmul %0, %1, %cst {dimension_numbers = #tpu.dot_dimension_numbers<[1], [1], [0], [0], [0, 0, 1, 0], [], []>} : vector<16x32xf32>, vector<16x32xf32>, vector<16x16xf32> -> vector<16x16xf32>
    %cst_3 = arith.constant 1.000000e+01 : f32
    %3 = vector.broadcast %cst_3 : f32 to vector<16x16xf32>
    %4 = arith.mulf %2, %3 : vector<16x16xf32>
    %c16_i32 = arith.constant 16 : i32
    %5 = arith.muli %arg0, %c16_i32 : i32
    %6 = tpu.iota {dimensions = array<i32: 0>} : vector<16x16xi32>
    %7 = vector.broadcast %5 : i32 to vector<16x16xi32>
    %8 = arith.addi %7, %6 : vector<16x16xi32>
    %c16_i32_4 = arith.constant 16 : i32
    %9 = arith.muli %arg1, %c16_i32_4 : i32
    %10 = tpu.iota {dimensions = array<i32: 1>} : vector<16x16xi32>
    %11 = vector.broadcast %9 : i32 to vector<16x16xi32>
    %12 = arith.addi %11, %10 : vector<16x16xi32>
    %13 = arith.cmpi eq, %8, %12 : vector<16x16xi32>
    %cst_5 = arith.constant -1.000000e+30 : f32
    %14 = vector.broadcast %cst_5 : f32 to vector<16x16xf32>
    %15 = arith.select %13, %14, %4 : vector<16x16xi1>, vector<16x16xf32>
    %c0_i32 = arith.constant 0 : i32
    %16 = arith.cmpi eq, %arg1, %c0_i32 : i32
    %17 = arith.extui %16 : i1 to i32
    %c0_i32_6 = arith.constant 0 : i32
    %18 = arith.cmpi ne, %17, %c0_i32_6 : i32
    scf.if %18 {
      %cst_19 = arith.constant 0xFF800000 : f32
      %38 = vector.broadcast %cst_19 : f32 to vector<16x1xf32>
      %c0_20 = arith.constant 0 : index
      %c0_21 = arith.constant 0 : index
      %39 = vector.load %arg5[%c0_20, %c0_21] : memref<16x1xf32, #tpu.memory_space<vmem>>, vector<16x1xf32>
      tpu.vector_store %arg5[%c0_20, %c0_21], %38 {strides = array<i32>} : memref<16x1xf32, #tpu.memory_space<vmem>>, vector<16x1xf32>,
      %cst_22 = arith.constant 0.000000e+00 : f32
      %40 = vector.broadcast %cst_22 : f32 to vector<16x1xf32>
      %c0_23 = arith.constant 0 : index
      %c0_24 = arith.constant 0 : index
      %41 = vector.load %arg6[%c0_23, %c0_24] : memref<16x1xf32, #tpu.memory_space<vmem>>, vector<16x1xf32>
      tpu.vector_store %arg6[%c0_23, %c0_24], %40 {strides = array<i32>} : memref<16x1xf32, #tpu.memory_space<vmem>>, vector<16x1xf32>,
      %c16_i32_25 = arith.constant 16 : i32
      %42 = arith.muli %arg0, %c16_i32_25 : i32
      %43 = tpu.iota {dimensions = array<i32: 0>} : vector<16x1xi32>
      %44 = vector.broadcast %42 : i32 to vector<16x1xi32>
      %45 = arith.addi %44, %43 : vector<16x1xi32>
      %c0_i32_26 = arith.constant 0 : i32
      %46 = vector.broadcast %c0_i32_26 : i32 to vector<16x1xi32>
      %47 = arith.cmpi eq, %45, %46 : vector<16x1xi32>
      %c8_i32 = arith.constant 8 : i32
      %48 = vector.broadcast %c8_i32 : i32 to vector<16x1xi32>
      %49 = arith.cmpi eq, %45, %48 : vector<16x1xi32>
      %50 = arith.ori %47, %49 : vector<16x1xi1>
      %51 = vector.extract_strided_slice %4 {offsets = [0, 1], sizes = [16, 1], strides = [1, 1]} : vector<16x16xf32> to vector<16x1xf32>
      %52 = vector.extract_strided_slice %4 {offsets = [0, 0], sizes = [16, 1], strides = [1, 1]} : vector<16x16xf32> to vector<16x1xf32>
      %53 = arith.select %50, %51, %52 : vector<16x1xi1>, vector<16x1xf32>
      %c0_27 = arith.constant 0 : index
      %c0_28 = arith.constant 0 : index
      %54 = vector.load %arg7[%c0_27, %c0_28] : memref<16x1xf32, #tpu.memory_space<vmem>>, vector<16x1xf32>
      tpu.vector_store %arg7[%c0_27, %c0_28], %53 {strides = array<i32>} : memref<16x1xf32, #tpu.memory_space<vmem>>, vector<16x1xf32>,
    } else {
    }
    %c0_7 = arith.constant 0 : index
    %c0_8 = arith.constant 0 : index
    %19 = vector.load %arg5[%c0_7, %c0_8] : memref<16x1xf32, #tpu.memory_space<vmem>>, vector<16x1xf32>
    %cst_9 = arith.constant dense<0xFF800000> : vector<16xf32>
    %20 = vector.multi_reduction <maximumf>, %15, %cst_9 [1] : vector<16x16xf32> to vector<16xf32>
    %21 = vector.shape_cast %20 : vector<16xf32> to vector<16x1xf32>
    %22 = arith.maximumf %19, %21 : vector<16x1xf32>
    %23 = arith.subf %19, %22 : vector<16x1xf32>
    %24 = math.exp %23 : vector<16x1xf32>
    %c0_10 = arith.constant 0 : index
    %c0_11 = arith.constant 0 : index
    %25 = vector.load %arg6[%c0_10, %c0_11] : memref<16x1xf32, #tpu.memory_space<vmem>>, vector<16x1xf32>
    %26 = arith.mulf %25, %24 : vector<16x1xf32>
    %27 = vector.broadcast %22 : vector<16x1xf32> to vector<16x16xf32>
    %28 = arith.subf %15, %27 : vector<16x16xf32>
    %29 = math.exp %28 : vector<16x16xf32>
    %cst_12 = arith.constant dense<0.000000e+00> : vector<16xf32>
    %30 = vector.multi_reduction <add>, %29, %cst_12 [1] : vector<16x16xf32> to vector<16xf32>
    %31 = vector.shape_cast %30 : vector<16xf32> to vector<16x1xf32>
    %32 = arith.addf %26, %31 : vector<16x1xf32>
    %c0_13 = arith.constant 0 : index
    %c0_14 = arith.constant 0 : index
    %33 = vector.load %arg6[%c0_13, %c0_14] : memref<16x1xf32, #tpu.memory_space<vmem>>, vector<16x1xf32>
    tpu.vector_store %arg6[%c0_13, %c0_14], %32 {strides = array<i32>} : memref<16x1xf32, #tpu.memory_space<vmem>>, vector<16x1xf32>,
    %c0_15 = arith.constant 0 : index
    %c0_16 = arith.constant 0 : index
    %34 = vector.load %arg5[%c0_15, %c0_16] : memref<16x1xf32, #tpu.memory_space<vmem>>, vector<16x1xf32>
    tpu.vector_store %arg5[%c0_15, %c0_16], %22 {strides = array<i32>} : memref<16x1xf32, #tpu.memory_space<vmem>>, vector<16x1xf32>,
    %c0_i32_17 = arith.constant 0 : i32
    %35 = arith.cmpi eq, %arg1, %c0_i32_17 : i32
    %36 = arith.extui %35 : i1 to i32
    %c0_i32_18 = arith.constant 0 : i32
    %37 = arith.cmpi ne, %36, %c0_i32_18 : i32
    scf.if %37 {
      %c0_19 = arith.constant 0 : index
      %c0_20 = arith.constant 0 : index
      %38 = vector.load %arg5[%c0_19, %c0_20] : memref<16x1xf32, #tpu.memory_space<vmem>>, vector<16x1xf32>
      %c0_21 = arith.constant 0 : index
      %c0_22 = arith.constant 0 : index
      %39 = vector.load %arg6[%c0_21, %c0_22] : memref<16x1xf32, #tpu.memory_space<vmem>>, vector<16x1xf32>
      %40 = math.log %39 : vector<16x1xf32>
      %41 = arith.addf %38, %40 : vector<16x1xf32>
      %c0_23 = arith.constant 0 : index
      %c0_24 = arith.constant 0 : index
      %42 = vector.load %arg7[%c0_23, %c0_24] : memref<16x1xf32, #tpu.memory_space<vmem>>, vector<16x1xf32>
      %43 = arith.subf %41, %42 : vector<16x1xf32>
      %c0_25 = arith.constant 0 : index
      %c0_26 = arith.constant 0 : index
      %44 = vector.load %arg4[%c0_25, %c0_26] : memref<16x1xf32, #tpu.memory_space<vmem>>, vector<16x1xf32>
      tpu.vector_store %arg4[%c0_25, %c0_26], %43 {strides = array<i32>} : memref<16x1xf32, #tpu.memory_space<vmem>>, vector<16x1xf32>,
    } else {
    }
    return
  }
  func.func @transform_0(%arg0: i32, %arg1: i32) -> (i32, i32) {
    %c0_i32 = arith.constant 0 : i32
    %c0_i32_0 = arith.constant 0 : i32
    return %arg0, %c0_i32 : i32, i32
  }
  func.func @transform_1(%arg0: i32, %arg1: i32) -> (i32, i32) {
    %c0_i32 = arith.constant 0 : i32
    %c0_i32_0 = arith.constant 0 : i32
    return %arg1, %c0_i32 : i32, i32
  }
  func.func @transform_2(%arg0: i32, %arg1: i32) -> (i32, i32) {
    %c0_i32 = arith.constant 0 : i32
    %c0_i32_0 = arith.constant 0 : i32
    return %arg0, %c0_i32 : i32, i32
  }
}

</mosaic_0001>

<llo_original>
// kernel: tpu_custom_call.1
$region0: #{tpu_custom_call.1}
  #allocation0 [shape = 'u32[]', space=smem, size = 0x4, offset = 0x4, fixed_abs, tag = 'smem constant byte address 0x4 - core index']
  #allocation1 [shape = 'u32[144,128]{1,0:T(1,128)}', space=vmem, size = 0x12000, scoped, tag = 'internal scratch']
  #allocation2 [shape = 'f32[16,1]{1,0:T(8,128)}', space=vmem, size = 0x2000, scoped, tag = 'scratch operand']
  #allocation3 [shape = 'f32[16,1]{1,0:T(8,128)}', space=vmem, size = 0x2000, scoped, tag = 'scratch operand']
  #allocation4 [shape = 'f32[16,1]{1,0:T(8,128)}', space=vmem, size = 0x2000, scoped, tag = 'scratch operand']
  %s0 = inlined_call_operand.hbm [shape: f32[16,32], index: 0, kind: input, shape index: {}]
  %s1 = inlined_call_operand.hbm [shape: f32[16,32], index: 1, kind: input, shape index: {}]
  %s2 = inlined_call_operand.hbm [shape: f32[16,1], index: 2, kind: output, shape index: {}]
  %s3 = sld [smem:[#allocation0]]
  $region34: #{tpu_custom_call.1} parent=0
    _
  %s5 = ssub.s32 1, %s3
  %s6 = scalar_select 0, %s5, %s3
  $region1: #{tpu_custom_call.1} parent=0
    #allocation5 [shape = 'u8[8192]{0}', space=vmem, size = 0x2000, scoped, tag = 'input window, operand 0, single buffered']
    #allocation6 [shape = 's32[1]{0}', space=sflag, size = 0x4, scoped, tag = 'scoped memory for tpu_custom_call.1']
    #allocation7 [shape = 's32[1]{0}', space=sflag, size = 0x4, scoped, tag = 'scoped memory for tpu_custom_call.1']
    #allocation8 [shape = 'u8[8192]{0}', space=vmem, size = 0x2000, scoped, tag = 'input window, operand 1, single buffered']
    #allocation9 [shape = 's32[1]{0}', space=sflag, size = 0x4, scoped, tag = 'scoped memory for tpu_custom_call.1']
    #allocation10 [shape = 'u8[8192]{0}', space=vmem, size = 0x2000, scoped, tag = 'output window, operand 0, single buffered']
    %7 = vsyncpa [#allocation6], 0
    %8 = vsyncpa [#allocation9], 0
    %9 = vsyncpa [#allocation7], 0
    // Predicated region
    $region2: #{tpu_custom_call.1} parent=1 // pred_check
      _
    $region3: #{tpu_custom_call.1} parent=1 // pred_check_branch
      %11 = sbr.rel (0) target = $region5
    $region4: #{tpu_custom_call.1} parent=1 // pred_region
      %s13 = ssub.s32 256, 256
      %14 = vsyncadd [#allocation6], %s13
      %s15 = sshll.u32 [#allocation5], 4
      %s16 = int_to_ptr.vmem [resolvable:$true] %s15
      %21 = dma.hbm_to_vmem [thread:$0]  %s0, 256, %s16, [#allocation6], 128, 128, 8
    $region5: #{tpu_custom_call.1} parent=1 // pred_fallthru
      _
    // Predicated region
    $region6: #{tpu_custom_call.1} parent=1 // pred_check
      _
    $region7: #{tpu_custom_call.1} parent=1 // pred_check_branch
      %23 = sbr.rel (0) target = $region9
    $region8: #{tpu_custom_call.1} parent=1 // pred_region
      %s25 = ssub.s32 256, 256
      %26 = vsyncadd [#allocation9], %s25
      %s27 = sshll.u32 [#allocation8], 4
      %s28 = int_to_ptr.vmem [resolvable:$true] %s27
      %33 = dma.hbm_to_vmem [thread:$0]  %s1, 256, %s28, [#allocation9], 128, 128, 8
    $region9: #{tpu_custom_call.1} parent=1 // pred_fallthru
      _
    // Predicated region
    $region10: #{tpu_custom_call.1} parent=1 // pred_check
      _
    $region11: #{tpu_custom_call.1} parent=1 // pred_check_branch
      %35 = sbr.rel (0) target = $region13
    $region12: #{tpu_custom_call.1} parent=1 // pred_region
      %36 = dma.done [#allocation6], 256
    $region13: #{tpu_custom_call.1} parent=1 // pred_fallthru
      _
    // Predicated region
    $region14: #{tpu_custom_call.1} parent=1 // pred_check
      _
    $region15: #{tpu_custom_call.1} parent=1 // pred_check_branch
      %38 = sbr.rel (0) target = $region17
    $region16: #{tpu_custom_call.1} parent=1 // pred_region
      %39 = dma.done [#allocation9], 256
    $region17: #{tpu_custom_call.1} parent=1 // pred_fallthru
      _
    %v40 = vld [vmem:[#allocation5] sm:$0xff]
    %v41 = vld [vmem:[#allocation5 + $0x8] sm:$0xff]
    %v42 = vld [vmem:[#allocation8] sm:$0xff]
    %v43 = vld [vmem:[#allocation8 + $0x8] sm:$0xff]
    %vm44 = vcmask 261120
    %v46 = vsel %vm44, %v40, 0
    %v49 = vsel %vm44, %v41, 0
    %v52 = vsel %vm44, %v42, 0
    %v55 = vsel %vm44, %v43, 0
    %57 = vmatprep.subr.mxu0 0.0
    %58 = vmatpush1.xpose.msra.mxu0 %v52
    %59 = vmatprep.subr.mxu0 0.0
    %60 = vmatpush1.xpose.msra.mxu0 %v55
    %61 = vmatprep.subr.mxu0 0.0
    %62 = vmatpush1.xpose.msra.mxu0 0.0
    %63 = vmatprep.subr.mxu0 0.0
    %64 = vmatpush1.xpose.msra.mxu0 0.0
    %65 = vmatprep.subr.mxu0 0.0
    %66 = vmatpush1.xpose.msra.mxu0 0.0
    %67 = vmatprep.subr.mxu0 0.0
    %68 = vmatpush1.xpose.msra.mxu0 0.0
    %69 = vmatprep.subr.mxu0 0.0
    %70 = vmatpush1.xpose.msra.mxu0 0.0
    %71 = vmatprep.subr.mxu0 0.0
    %72 = vmatpush1.xpose.msra.mxu0 0.0
    %73 = vmatprep.subr.mxu0 0.0
    %74 = vmatpush1.xpose.msra.mxu0 0.0
    %75 = vmatprep.subr.mxu0 0.0
    %76 = vmatpush1.xpose.msra.mxu0 0.0
    %77 = vmatprep.subr.mxu0 0.0
    %78 = vmatpush1.xpose.msra.mxu0 0.0
    %79 = vmatprep.subr.mxu0 0.0
    %80 = vmatpush1.xpose.msra.mxu0 0.0
    %81 = vmatprep.subr.mxu0 0.0
    %82 = vmatpush1.xpose.msra.mxu0 0.0
    %83 = vmatprep.subr.mxu0 0.0
    %84 = vmatpush1.xpose.msra.mxu0 0.0
    %85 = vmatprep.subr.mxu0 0.0
    %86 = vmatpush1.xpose.msra.mxu0 0.0
    %87 = vmatprep.subr.mxu0 0.0
    %88 = vmatpush1.xpose.msra.mxu0 0.0
    %89 = vmatprep.subr.mxu0 0.0
    %90 = vmatpush1.xpose.msra.mxu0 0.0
    %91 = vmatprep.subr.mxu0 0.0
    %92 = vmatpush1.xpose.msra.mxu0 0.0
    %93 = vmatprep.subr.mxu0 0.0
    %94 = vmatpush1.xpose.msra.mxu0 0.0
    %95 = vmatprep.subr.mxu0 0.0
    %96 = vmatpush1.xpose.msra.mxu0 0.0
    %97 = vmatprep.subr.mxu0 0.0
    %98 = vmatpush1.xpose.msra.mxu0 0.0
    %99 = vmatprep.subr.mxu0 0.0
    %100 = vmatpush1.xpose.msra.mxu0 0.0
    %101 = vmatprep.subr.mxu0 0.0
    %102 = vmatpush1.xpose.msra.mxu0 0.0
    %103 = vmatprep.subr.mxu0 0.0
    %104 = vmatpush1.xpose.msra.mxu0 0.0
    %105 = vmatprep.subr.mxu0 0.0
    %106 = vmatpush1.xpose.msra.mxu0 0.0
    %107 = vmatprep.subr.mxu0 0.0
    %108 = vmatpush1.xpose.msra.mxu0 0.0
    %109 = vmatprep.subr.mxu0 0.0
    %110 = vmatpush1.xpose.msra.mxu0 0.0
    %111 = vmatprep.subr.mxu0 0.0
    %112 = vmatpush1.xpose.msra.mxu0 0.0
    %113 = vmatprep.subr.mxu0 0.0
    %114 = vmatpush1.xpose.msra.mxu0 0.0
    %115 = vmatprep.subr.mxu0 0.0
    %116 = vmatpush1.xpose.msra.mxu0 0.0
    %117 = vmatprep.subr.mxu0 0.0
    %118 = vmatpush1.xpose.msra.mxu0 0.0
    %119 = vmatprep.subr.mxu0 0.0
    %120 = vmatpush1.xpose.msra.mxu0 0.0
    %121 = vmatprep.mubr.f32.mxu0 0.0
    %122 = vmatmul.mubr.f32.gmra.mrb[0].mxu0 %v46
    %v123 = vpop.f32.mrb[0].mxu0
    %v124 = vadd.f32 0.0, %v123
    %v125 = vpop.f32.mrb[0].mxu0
    %126 = vmatprep.mubr.f32.mxu0 0.0
    %127 = vmatmul.mubr.f32.gmra.mrb[0].mxu0 %v49
    %v128 = vpop.f32.mrb[0].mxu0
    %v129 = vadd.f32 0.0, %v128
    %v130 = vpop.f32.mrb[0].mxu0
    %131 = vdwg.mxu0
    %v132 = vmul.f32 %v124, 10.0
    %v133 = vmul.f32 %v129, 10.0
    %s134 = smul.u32 0, 16
    %v135 = vlaneseq
    %v136 = vshrl.u32 %v135, 7
    %v137 = vadd.s32 %v136, 8
    %v138 = vstv %s134
    %v139 = vadd.s32 %v138, %v136
    %v140 = vadd.s32 %v138, %v137
    %s141 = smul.u32 0, 16
    %v142 = vlaneseq
    %v143 = vand.u32 %v142, 127
    %v144 = vstv %s141
    %v145 = vadd.s32 %v144, %v143
    %vm146 = vcmp.eq.s32.totalorder %v139, %v145
    %vm147 = vcmp.eq.s32.totalorder %v140, %v145
    %v148 = vsel %vm146, -1e+30, %v132
    %v149 = vsel %vm147, -1e+30, %v133
    %p150 = scmp.eq.s32.totalorder 0, 0
    // Predicated region
    $region18: #{tpu_custom_call.1} parent=1 // pred_check
      %p151 = pneg %p150
    $region19: #{tpu_custom_call.1} parent=1 // pred_check_branch
      %153 = sbr.rel (%p151) target = $region21
    $region20: #{tpu_custom_call.1} parent=1 // pred_region
      %vm154 = vcmask 7168
      %155 = vst.msk [vmem:[#allocation2] sm:$0xff] %vm154, -inf
      %156 = vst.msk [vmem:[#allocation2 + $0x8] sm:$0xff] %vm154, -inf
      %157 = vst.msk [vmem:[#allocation3] sm:$0xff] %vm154, 0.0
      %158 = vst.msk [vmem:[#allocation3 + $0x8] sm:$0xff] %vm154, 0.0
      %vm159 = vcmp.eq.s32.totalorder %v139, 0
      %vm160 = vcmp.eq.s32.totalorder %v140, 0
      %vm161 = vcmp.eq.s32.totalorder %v139, 8
      %vm162 = vcmp.eq.s32.totalorder %v140, 8
      %vm163 = vmor %vm159, %vm161
      %vm164 = vmor %vm160, %vm162
      %167 = vrot.lane.b32.xlu0 %v132, 1
      %v168 = vpop.permute.xlu0 %167
      %169 = vrot.lane.b32.xlu0 %v133, 1
      %v170 = vpop.permute.xlu0 %169
      %v173 = vsel %vm163, %v132, %v168
      %v174 = vsel %vm164, %v133, %v170
      %177 = vrot.lane.b32.xlu0 %v173, 127
      %v178 = vpop.permute.xlu0 %177
      %179 = vrot.lane.b32.xlu0 %v174, 127
      %v180 = vpop.permute.xlu0 %179
      %183 = vst.msk [vmem:[#allocation4] sm:$0xff] %vm154, %v178
      %184 = vst.msk [vmem:[#allocation4 + $0x8] sm:$0xff] %vm154, %v180
    $region21: #{tpu_custom_call.1} parent=1 // pred_fallthru
      _
    %v185 = vld [vmem:[#allocation2] sm:$0xff]
    %v186 = vld [vmem:[#allocation2 + $0x8] sm:$0xff]
    %vm187 = vcmask 130048
    %v188 = vsel %vm187, %v148, -inf
    %189 = vmax.xlane.f32.xlu0 %v188
    %v190 = vpop.xlane.xlu0 %189
    %v191 = vsel %vm187, %v149, -inf
    %192 = vmax.xlane.f32.xlu0 %v191
    %v193 = vpop.xlane.xlu0 %192
    %v194 = vmax.f32 %v185, %v190
    %v195 = vmax.f32 %v186, %v193
    %v196 = vsub.f32 %v185, %v194
    %v197 = vsub.f32 %v186, %v195
    %v198 = vmul.f32 %v196, 1.442695
    %v199 = vpow.pop %v198
    %v200 = vmul.f32 %v197, 1.442695
    %v201 = vpow.pop %v200
    %v202 = vld [vmem:[#allocation3] sm:$0xff]
    %v203 = vld [vmem:[#allocation3 + $0x8] sm:$0xff]
    %v204 = vmul.f32 %v202, %v199
    %v205 = vmul.f32 %v203, %v201
    %207 = vset.pattern.permute.xlu0 0
    %208 = vperm.xlu0 %207, %v194
    %v209 = vpop.permute.xlu0 %208
    %212 = vset.pattern.permute.xlu0 0
    %213 = vperm.xlu0 %212, %v195
    %v214 = vpop.permute.xlu0 %213
    %v216 = vsub.f32 %v148, %v209
    %v217 = vsub.f32 %v149, %v214
    %v218 = vmul.f32 %v216, 1.442695
    %v219 = vpow.pop %v218
    %v220 = vmul.f32 %v217, 1.442695
    %v221 = vpow.pop %v220
    %v222 = vsel %vm187, %v219, 0.0
    %223 = vadd.xlane.f32.xlu0 %v222
    %v224 = vpop.xlane.xlu0 %223
    %v225 = vsel %vm187, %v221, 0.0
    %226 = vadd.xlane.f32.xlu0 %v225
    %v227 = vpop.xlane.xlu0 %226
    %v228 = vadd.f32 %v204, %v224
    %v229 = vadd.f32 %v205, %v227
    %vm230 = vcmask 7168
    %231 = vst.msk [vmem:[#allocation3] sm:$0xff] %vm230, %v228
    %232 = vst.msk [vmem:[#allocation3 + $0x8] sm:$0xff] %vm230, %v229
    %233 = vst.msk [vmem:[#allocation2] sm:$0xff] %vm230, %v194
    %234 = vst.msk [vmem:[#allocation2 + $0x8] sm:$0xff] %vm230, %v195
    // Predicated region
    $region22: #{tpu_custom_call.1} parent=1 // pred_check
      %p235 = pneg %p150
    $region23: #{tpu_custom_call.1} parent=1 // pred_check_branch
      %237 = sbr.rel (%p235) target = $region25
    $region24: #{tpu_custom_call.1} parent=1 // pred_region
      %v238 = vld [vmem:[#allocation2] sm:$0xff]
      %v239 = vld [vmem:[#allocation2 + $0x8] sm:$0xff]
      %v240 = vld [vmem:[#allocation3] sm:$0xff]
      %v241 = vld [vmem:[#allocation3 + $0x8] sm:$0xff]
      %v242 = vlog2.pop %v240
      %v243 = vmul.f32 %v242, 0.6931472
      %v244 = vlog2.pop %v241
      %v245 = vmul.f32 %v244, 0.6931472
      %v246 = vadd.f32 %v238, %v243
      %v247 = vadd.f32 %v239, %v245
      %v248 = vld [vmem:[#allocation4] sm:$0xff]
      %v249 = vld [vmem:[#allocation4 + $0x8] sm:$0xff]
      %v250 = vsub.f32 %v246, %v248
      %v251 = vsub.f32 %v247, %v249
      %252 = vst.msk [vmem:[#allocation10] sm:$0xff] %vm230, %v250
      %253 = vst.msk [vmem:[#allocation10 + $0x8] sm:$0xff] %vm230, %v251
    $region25: #{tpu_custom_call.1} parent=1 // pred_fallthru
      _
    // Predicated region
    $region26: #{tpu_custom_call.1} parent=1 // pred_check
      _
    $region27: #{tpu_custom_call.1} parent=1 // pred_check_branch
      %255 = sbr.rel (0) target = $region29
    $region28: #{tpu_custom_call.1} parent=1 // pred_region
      %s257 = ssub.s32 256, 256
      %258 = vsyncadd [#allocation7], %s257
      %s259 = sshll.u32 [#allocation10], 4
      %s260 = int_to_ptr.vmem [resolvable:$true] %s259
      %265 = dma.vmem_to_hbm [thread:$0]  %s260, 256, %s2, [#allocation7], 128, 128, 8
    $region29: #{tpu_custom_call.1} parent=1 // pred_fallthru
      _
    // Predicated region
    $region30: #{tpu_custom_call.1} parent=1 // pred_check
      _
    $region31: #{tpu_custom_call.1} parent=1 // pred_check_branch
      %267 = sbr.rel (0) target = $region33
    $region32: #{tpu_custom_call.1} parent=1 // pred_region
      %268 = dma.done [#allocation7], 256
    $region33: #{tpu_custom_call.1} parent=1 // pred_fallthru
      _
    %269 = vsyncpa [#allocation6], 1
    %270 = vsyncpa [#allocation9], 1
    %271 = vsyncpa [#allocation7], 1

</llo_original>
